<compile_context>
chip_gen: v5e
topology: v5e:2x2
jax: 0.10.0
libtpu: 0.0.40
codegen_flags: <defaults>
</compile_context>

<pallas_src>
import functools

import jax
import jax.numpy as jnp
from jax.experimental import pallas as pl
from jax.experimental.pallas import tpu as pltpu


def _interp_matrix(in_size, out_size):
    """Dense (out_size, in_size) 1-D bilinear interpolation matrix.

    Matches torch.nn.functional.interpolate(mode='bilinear',
    align_corners=False): half-pixel centers, negative source coords clamped
    to 0, upper neighbour clamped to in_size - 1.
    """
    scale = in_size / out_size
    o = jnp.arange(out_size, dtype=jnp.float32)
    src = jnp.maximum((o + 0.5) * scale - 0.5, 0.0)
    i0f = jnp.floor(src)
    w1 = src - i0f
    w0 = 1.0 - w1
    i0 = jnp.minimum(i0f.astype(jnp.int32), in_size - 1)
    i1 = jnp.minimum(i0 + 1, in_size - 1)
    rows = jnp.arange(out_size)
    m = jnp.zeros((out_size, in_size), jnp.float32)
    m = m.at[rows, i0].add(w0)
    m = m.at[rows, i1].add(w1)
    return m


def _bilinear_kernel(x_ref, wh_ref, ww_ref, o_ref):
    # x_ref : (Bnc, H, W)   slab of fused N*C images
    # wh_ref: (OH, H)       row-interpolation matrix
    # ww_ref: (W, OW)       column-interpolation matrix
    # o_ref : (Bnc, OH, OW)
    b = x_ref.shape[0]
    x = x_ref[...].astype(jnp.float32)
    ww = jnp.broadcast_to(ww_ref[...], (b,) + ww_ref.shape)   # (B, W, OW)
    wh = jnp.broadcast_to(wh_ref[...], (b,) + wh_ref.shape)   # (B, OH, H)
    # Separable bilinear resize as two batched MXU matmuls (no gathers).
    y1 = jnp.einsum('bhw,bwq->bhq', x, ww,
                    preferred_element_type=jnp.float32)       # (B, H, OW)
    y = jnp.einsum('boh,bhq->boq', wh, y1,
                   preferred_element_type=jnp.float32)        # (B, OH, OW)
    o_ref[...] = y.astype(o_ref.dtype)


def bilinear_resize_nchw(x, out_size, *, vmem_limit_bytes=32 * 1024 * 1024):
    """F.interpolate(x, size=out_size, mode='bilinear', align_corners=False)."""
    n, c, h, w = x.shape
    oh, ow = out_size
    nc = n * c
    x3 = x.reshape(nc, h, w)

    wh = _interp_matrix(h, oh)          # (OH, H)
    ww = _interp_matrix(w, ow).T        # (W, OW)

    # Tile over the fused (N*C) axis: pick the largest slab whose in+out tiles
    # (double-buffered by the pipeline) stay around ~2 MiB — big enough to
    # amortise the ~0.35 us per-grid-step overhead, small enough for the
    # 64 MiB-VMEM generation with the explicit scoped limit below.
    itemsize = jnp.dtype(x.dtype).itemsize
    bytes_per_img = (h * w + oh * ow) * itemsize
    target_block_bytes = 2 * 1024 * 1024
    bnc = max(1, min(nc, target_block_bytes // max(1, bytes_per_img)))
    grid = (pl.cdiv(nc, bnc),)

    flops = 2 * nc * (h * w * ow + oh * h * ow)
    bytes_accessed = nc * (h * w + oh * ow) * itemsize + (oh * h + w * ow) * 4

    out3 = pl.pallas_call(
        _bilinear_kernel,
        out_shape=jax.ShapeDtypeStruct((nc, oh, ow), x.dtype),
        grid_spec=pltpu.PrefetchScalarGridSpec(
            num_scalar_prefetch=0,
            grid=grid,
            in_specs=[
                pl.BlockSpec((bnc, h, w), lambda i: (i, 0, 0)),
                pl.BlockSpec((oh, h), lambda i: (0, 0)),
                pl.BlockSpec((w, ow), lambda i: (0, 0)),
            ],
            out_specs=pl.BlockSpec((bnc, oh, ow), lambda i: (i, 0, 0)),
        ),
        compiler_params=pltpu.CompilerParams(
            dimension_semantics=("parallel",),
            vmem_limit_bytes=vmem_limit_bytes,
        ),
        cost_estimate=pl.CostEstimate(
            flops=flops, transcendentals=0, bytes_accessed=bytes_accessed),
    )(x3, wh, ww)
    return out3.reshape(n, c, oh, ow)


def teacher_trainer_forward(x, input_size, classifier_fn=None):
    """Forward of TeacherTrainerWrapper: classifier -> bilinear resize -> dict."""
    # TODO(synk): `classifier` is an arbitrary nn.Module injected at __init__;
    # it is applied here as an external JAX callable (identity by default)
    # rather than lowered into the Pallas kernel.
    if classifier_fn is not None:
        x = classifier_fn(x)
    y = bilinear_resize_nchw(x, input_size)
    return {'out': y}


def _reference(x, out_size):
    n, c, h, w = x.shape
    oh, ow = out_size
    wh = _interp_matrix(h, oh)          # (OH, H)
    ww = _interp_matrix(w, ow).T        # (W, OW)
    y = jnp.einsum('oh,nchw->ncow', wh, x.astype(jnp.float32))
    y = jnp.einsum('ncow,wq->ncoq', y, ww)
    return y.astype(x.dtype)


if __name__ == "__main__":
    key = jax.random.PRNGKey(0)
    x = jax.random.normal(key, (2, 4, 16, 16), dtype=jnp.float32)
    input_size = (32, 32)

    out = teacher_trainer_forward(x, input_size)['out']
    jax.block_until_ready(out)

    ref = _reference(x, input_size)
    assert out.shape == ref.shape == (2, 4, 32, 32)
    assert jnp.allclose(out, ref, atol=1e-4, rtol=1e-4), float(
        jnp.max(jnp.abs(out.astype(jnp.float32) - ref.astype(jnp.float32))))
    print("KERNEL_OK")
</pallas_src>

<mosaic_0001>
module attributes {stable_mosaic.version = 11 : i64} {
  func.func @_bilinear_kernel(%arg0: i32, %arg1: memref<8x16x16xf32, #tpu.memory_space<vmem>>, %arg2: memref<32x16xf32, #tpu.memory_space<vmem>>, %arg3: memref<16x32xf32, #tpu.memory_space<vmem>>, %arg4: memref<8x32x32xf32, #tpu.memory_space<vmem>>) attributes {dimension_semantics = [#tpu.dimension_semantics<parallel>], iteration_bounds = array<i64: 1>, scalar_prefetch = 0 : i64, scratch_operands = 0 : i64, tpu.core_type = #tpu.core_type<tc>, window_params = [{transform_indices = @transform_0, window_bounds = array<i64: 8, 16, 16>}, {pipeline_mode = #tpu.pipeline_mode<synchronous>, transform_indices = @transform_1, window_bounds = array<i64: 32, 16>}, {pipeline_mode = #tpu.pipeline_mode<synchronous>, transform_indices = @transform_2, window_bounds = array<i64: 16, 32>}, {transform_indices = @transform_3, window_bounds = array<i64: 8, 32, 32>}]} {
    %c0 = arith.constant 0 : index
    %c0_0 = arith.constant 0 : index
    %c0_1 = arith.constant 0 : index
    %0 = vector.load %arg1[%c0, %c0_0, %c0_1] : memref<8x16x16xf32, #tpu.memory_space<vmem>>, vector<8x16x16xf32>
    %c0_2 = arith.constant 0 : index
    %c0_3 = arith.constant 0 : index
    %1 = vector.load %arg3[%c0_2, %c0_3] : memref<16x32xf32, #tpu.memory_space<vmem>>, vector<16x32xf32>
    %2 = vector.shape_cast %1 : vector<16x32xf32> to vector<1x16x32xf32>
    %3 = vector.broadcast %2 : vector<1x16x32xf32> to vector<8x16x32xf32>
    %c0_4 = arith.constant 0 : index
    %c0_5 = arith.constant 0 : index
    %4 = vector.load %arg2[%c0_4, %c0_5] : memref<32x16xf32, #tpu.memory_space<vmem>>, vector<32x16xf32>
    %5 = vector.shape_cast %4 : vector<32x16xf32> to vector<1x32x16xf32>
    %6 = vector.broadcast %5 : vector<1x32x16xf32> to vector<8x32x16xf32>
    "tpu.trace_start"() <{level = 10 : i32, message = "bhw,bwq->bhq"}> : () -> ()
    %cst = arith.constant dense<0.000000e+00> : vector<8x16x32xf32>
    %7 = tpu.matmul %0, %3, %cst {dimension_numbers = #tpu.dot_dimension_numbers<[2], [1], [1], [2], [0, 0, 0, 1, 1, 2], [0], [0]>} : vector<8x16x16xf32>, vector<8x16x32xf32>, vector<8x16x32xf32> -> vector<8x16x32xf32>
    "tpu.trace_stop"() : () -> ()
    "tpu.trace_start"() <{level = 10 : i32, message = "boh,bhq->boq"}> : () -> ()
    %cst_6 = arith.constant dense<0.000000e+00> : vector<8x32x32xf32>
    %8 = tpu.matmul %6, %7, %cst_6 {dimension_numbers = #tpu.dot_dimension_numbers<[2], [1], [1], [2], [0, 0, 0, 1, 1, 2], [0], [0]>} : vector<8x32x16xf32>, vector<8x16x32xf32>, vector<8x32x32xf32> -> vector<8x32x32xf32>
    "tpu.trace_stop"() : () -> ()
    %c0_7 = arith.constant 0 : index
    %c0_8 = arith.constant 0 : index
    %c0_9 = arith.constant 0 : index
    %9 = vector.load %arg4[%c0_7, %c0_8, %c0_9] : memref<8x32x32xf32, #tpu.memory_space<vmem>>, vector<8x32x32xf32>
    tpu.vector_store %arg4[%c0_7, %c0_8, %c0_9], %8 {strides = array<i32>} : memref<8x32x32xf32, #tpu.memory_space<vmem>>, vector<8x32x32xf32>,
    return
  }
  func.func @transform_0(%arg0: i32) -> (i32, i32, i32) {
    %c0_i32 = arith.constant 0 : i32
    %c0_i32_0 = arith.constant 0 : i32
    %c0_i32_1 = arith.constant 0 : i32
    return %arg0, %c0_i32, %c0_i32_0 : i32, i32, i32
  }
  func.func @transform_1(%arg0: i32) -> (i32, i32) {
    %c0_i32 = arith.constant 0 : i32
    %c0_i32_0 = arith.constant 0 : i32
    %c0_i32_1 = arith.constant 0 : i32
    return %c0_i32, %c0_i32_0 : i32, i32
  }
  func.func @transform_2(%arg0: i32) -> (i32, i32) {
    %c0_i32 = arith.constant 0 : i32
    %c0_i32_0 = arith.constant 0 : i32
    %c0_i32_1 = arith.constant 0 : i32
    return %c0_i32, %c0_i32_0 : i32, i32
  }
  func.func @transform_3(%arg0: i32) -> (i32, i32, i32) {
    %c0_i32 = arith.constant 0 : i32
    %c0_i32_0 = arith.constant 0 : i32
    %c0_i32_1 = arith.constant 0 : i32
    return %arg0, %c0_i32, %c0_i32_0 : i32, i32, i32
  }
}

</mosaic_0001>

<llo_original>
// kernel: tpu_custom_call.1
$region0: #{tpu_custom_call.1}
  #allocation0 [shape = 'u32[]', space=smem, size = 0x4, offset = 0x4, fixed_abs, tag = 'smem constant byte address 0x4 - core index']
  #allocation1 [shape = 'u32[72,128]{1,0:T(1,128)}', space=vmem, size = 0x9000, scoped, tag = 'internal scratch']
  %s0 = inlined_call_operand.hbm [shape: f32[8,16,16], index: 0, kind: input, shape index: {}]
  %s1 = inlined_call_operand.vmem [shape: f32[32,16], index: 1, kind: input, shape index: {}]
  %s2 = inlined_call_operand.vmem [shape: f32[16,32], index: 2, kind: input, shape index: {}]
  %s3 = inlined_call_operand.hbm [shape: f32[8,32,32], index: 3, kind: output, shape index: {}]
  %s4 = sld [smem:[#allocation0]]
  $region26: #{tpu_custom_call.1} parent=0
    _
  %s6 = ssub.s32 1, %s4
  %s7 = scalar_select 0, %s6, %s4
  $region1: #{tpu_custom_call.1} parent=0
    #allocation2 [shape = 'u8[65536]{0}', space=vmem, size = 0x10000, scoped, tag = 'input window, operand 0, single buffered']
    #allocation3 [shape = 's32[1]{0}', space=sflag, size = 0x4, scoped, tag = 'scoped memory for tpu_custom_call.1']
    #allocation4 [shape = 's32[1]{0}', space=sflag, size = 0x4, scoped, tag = 'scoped memory for tpu_custom_call.1']
    #allocation5 [shape = 'u8[131072]{0}', space=vmem, size = 0x20000, scoped, tag = 'output window, operand 0, single buffered']
    %8 = vsyncpa [#allocation3], 0
    %9 = vsyncpa [#allocation4], 0
    // Predicated region
    $region2: #{tpu_custom_call.1} parent=1 // pred_check
      _
    $region3: #{tpu_custom_call.1} parent=1 // pred_check_branch
      %11 = sbr.rel (0) target = $region5
    $region4: #{tpu_custom_call.1} parent=1 // pred_region
      %13 = vsyncadd [#allocation3], 0
      %s14 = sshll.u32 %s0, 4
      %s15 = int_to_ptr.hbm [resolvable:$true] %s14
      %s16 = sshll.u32 [#allocation2], 4
      %s17 = int_to_ptr.vmem [resolvable:$true] %s16
      %22 = dma.hbm_to_vmem [thread:$0]  %s15, 2048, %s17, [#allocation3], 128, 128, 8
    $region5: #{tpu_custom_call.1} parent=1 // pred_fallthru
      _
    // Predicated region
    $region6: #{tpu_custom_call.1} parent=1 // pred_check
      _
    $region7: #{tpu_custom_call.1} parent=1 // pred_check_branch
      %24 = sbr.rel (0) target = $region9
    $region8: #{tpu_custom_call.1} parent=1 // pred_region
      _
    $region9: #{tpu_custom_call.1} parent=1 // pred_fallthru
      _
    // Predicated region
    $region10: #{tpu_custom_call.1} parent=1 // pred_check
      _
    $region11: #{tpu_custom_call.1} parent=1 // pred_check_branch
      %26 = sbr.rel (0) target = $region13
    $region12: #{tpu_custom_call.1} parent=1 // pred_region
      _
    $region13: #{tpu_custom_call.1} parent=1 // pred_fallthru
      _
    // Predicated region
    $region14: #{tpu_custom_call.1} parent=1 // pred_check
      _
    $region15: #{tpu_custom_call.1} parent=1 // pred_check_branch
      %28 = sbr.rel (0) target = $region17
    $region16: #{tpu_custom_call.1} parent=1 // pred_region
      %30 = dma.done [#allocation3], 2048
    $region17: #{tpu_custom_call.1} parent=1 // pred_fallthru
      _
    %v31 = vld [vmem:[#allocation2] sm:$0xff]
    %v32 = vld [vmem:[#allocation2 + $0x8] sm:$0xff]
    %v33 = vld [vmem:[#allocation2 + $0x10] sm:$0xff]
    %v34 = vld [vmem:[#allocation2 + $0x18] sm:$0xff]
    %v35 = vld [vmem:[#allocation2 + $0x20] sm:$0xff]
    %v36 = vld [vmem:[#allocation2 + $0x28] sm:$0xff]
    %v37 = vld [vmem:[#allocation2 + $0x30] sm:$0xff]
    %v38 = vld [vmem:[#allocation2 + $0x38] sm:$0xff]
    %v39 = vld [vmem:[#allocation2 + $0x40] sm:$0xff]
    %v40 = vld [vmem:[#allocation2 + $0x48] sm:$0xff]
    %v41 = vld [vmem:[#allocation2 + $0x50] sm:$0xff]
    %v42 = vld [vmem:[#allocation2 + $0x58] sm:$0xff]
    %v43 = vld [vmem:[#allocation2 + $0x60] sm:$0xff]
    %v44 = vld [vmem:[#allocation2 + $0x68] sm:$0xff]
    %v45 = vld [vmem:[#allocation2 + $0x70] sm:$0xff]
    %v46 = vld [vmem:[#allocation2 + $0x78] sm:$0xff]
    %v47 = vld [vmem:[%s2] sm:$0xff]
    %v48 = vld [vmem:[%s2 + $0x8] sm:$0xff]
    %v49 = vld [vmem:[%s1] sm:$0xff]
    %v50 = vld [vmem:[%s1 + $0x8] sm:$0xff]
    %v51 = vld [vmem:[%s1 + $0x10] sm:$0xff]
    %v52 = vld [vmem:[%s1 + $0x18] sm:$0xff]
    %vm53 = vcmask 130048
    %v55 = vsel %vm53, %v31, 0
    %v58 = vsel %vm53, %v32, 0
    %60 = vmatpush.msra.mxu0 0.0
    %61 = vmatpush.msra.mxu0 0.0
    %62 = vmatpush.msra.mxu0 0.0
    %63 = vmatpush.msra.mxu0 0.0
    %64 = vmatpush.msra.mxu0 0.0
    %65 = vmatpush.msra.mxu0 0.0
    %66 = vmatpush.msra.mxu0 0.0
    %67 = vmatpush.msra.mxu0 0.0
    %68 = vmatpush.msra.mxu0 0.0
    %69 = vmatpush.msra.mxu0 0.0
    %70 = vmatpush.msra.mxu0 0.0
    %71 = vmatpush.msra.mxu0 0.0
    %72 = vmatpush.msra.mxu0 0.0
    %73 = vmatpush.msra.mxu0 0.0
    %74 = vmatpush.msra.mxu0 %v48
    %75 = vmatpush.msra.mxu0 %v47
    %76 = vmatmul.f32.gmra.mxu0 %v55
    %v77 = vpop.f32.mrf.mxu0
    %v78 = vadd.f32 0.0, %v77
    %79 = vmatmul.f32.gmra.mxu0 %v58
    %v80 = vpop.f32.mrf.mxu0
    %v81 = vadd.f32 0.0, %v80
    %82 = vdwg.mxu0
    %v84 = vsel %vm53, %v33, 0
    %v87 = vsel %vm53, %v34, 0
    %89 = vmatpush.msra.mxu0 0.0
    %90 = vmatpush.msra.mxu0 0.0
    %91 = vmatpush.msra.mxu0 0.0
    %92 = vmatpush.msra.mxu0 0.0
    %93 = vmatpush.msra.mxu0 0.0
    %94 = vmatpush.msra.mxu0 0.0
    %95 = vmatpush.msra.mxu0 0.0
    %96 = vmatpush.msra.mxu0 0.0
    %97 = vmatpush.msra.mxu0 0.0
    %98 = vmatpush.msra.mxu0 0.0
    %99 = vmatpush.msra.mxu0 0.0
    %100 = vmatpush.msra.mxu0 0.0
    %101 = vmatpush.msra.mxu0 0.0
    %102 = vmatpush.msra.mxu0 0.0
    %103 = vmatpush.msra.mxu0 %v48
    %104 = vmatpush.msra.mxu0 %v47
    %105 = vmatmul.f32.gmra.mxu0 %v84
    %v106 = vpop.f32.mrf.mxu0
    %v107 = vadd.f32 0.0, %v106
    %108 = vmatmul.f32.gmra.mxu0 %v87
    %v109 = vpop.f32.mrf.mxu0
    %v110 = vadd.f32 0.0, %v109
    %111 = vdwg.mxu0
    %v113 = vsel %vm53, %v35, 0
    %v116 = vsel %vm53, %v36, 0
    %118 = vmatpush.msra.mxu0 0.0
    %119 = vmatpush.msra.mxu0 0.0
    %120 = vmatpush.msra.mxu0 0.0
    %121 = vmatpush.msra.mxu0 0.0
    %122 = vmatpush.msra.mxu0 0.0
    %123 = vmatpush.msra.mxu0 0.0
    %124 = vmatpush.msra.mxu0 0.0
    %125 = vmatpush.msra.mxu0 0.0
    %126 = vmatpush.msra.mxu0 0.0
    %127 = vmatpush.msra.mxu0 0.0
    %128 = vmatpush.msra.mxu0 0.0
    %129 = vmatpush.msra.mxu0 0.0
    %130 = vmatpush.msra.mxu0 0.0
    %131 = vmatpush.msra.mxu0 0.0
    %132 = vmatpush.msra.mxu0 %v48
    %133 = vmatpush.msra.mxu0 %v47
    %134 = vmatmul.f32.gmra.mxu0 %v113
    %v135 = vpop.f32.mrf.mxu0
    %v136 = vadd.f32 0.0, %v135
    %137 = vmatmul.f32.gmra.mxu0 %v116
    %v138 = vpop.f32.mrf.mxu0
    %v139 = vadd.f32 0.0, %v138
    %140 = vdwg.mxu0
    %v142 = vsel %vm53, %v37, 0
    %v145 = vsel %vm53, %v38, 0
    %147 = vmatpush.msra.mxu0 0.0
    %148 = vmatpush.msra.mxu0 0.0
    %149 = vmatpush.msra.mxu0 0.0
    %150 = vmatpush.msra.mxu0 0.0
    %151 = vmatpush.msra.mxu0 0.0
    %152 = vmatpush.msra.mxu0 0.0
    %153 = vmatpush.msra.mxu0 0.0
    %154 = vmatpush.msra.mxu0 0.0
    %155 = vmatpush.msra.mxu0 0.0
    %156 = vmatpush.msra.mxu0 0.0
    %157 = vmatpush.msra.mxu0 0.0
    %158 = vmatpush.msra.mxu0 0.0
    %159 = vmatpush.msra.mxu0 0.0
    %160 = vmatpush.msra.mxu0 0.0
    %161 = vmatpush.msra.mxu0 %v48
    %162 = vmatpush.msra.mxu0 %v47
    %163 = vmatmul.f32.gmra.mxu0 %v142
    %v164 = vpop.f32.mrf.mxu0
    %v165 = vadd.f32 0.0, %v164
    %166 = vmatmul.f32.gmra.mxu0 %v145
    %v167 = vpop.f32.mrf.mxu0
    %v168 = vadd.f32 0.0, %v167
    %169 = vdwg.mxu0
    %v171 = vsel %vm53, %v39, 0
    %v174 = vsel %vm53, %v40, 0
    %176 = vmatpush.msra.mxu0 0.0
    %177 = vmatpush.msra.mxu0 0.0
    %178 = vmatpush.msra.mxu0 0.0
    %179 = vmatpush.msra.mxu0 0.0
    %180 = vmatpush.msra.mxu0 0.0
    %181 = vmatpush.msra.mxu0 0.0
    %182 = vmatpush.msra.mxu0 0.0
    %183 = vmatpush.msra.mxu0 0.0
    %184 = vmatpush.msra.mxu0 0.0
    %185 = vmatpush.msra.mxu0 0.0
    %186 = vmatpush.msra.mxu0 0.0
    %187 = vmatpush.msra.mxu0 0.0
    %188 = vmatpush.msra.mxu0 0.0
    %189 = vmatpush.msra.mxu0 0.0
    %190 = vmatpush.msra.mxu0 %v48
    %191 = vmatpush.msra.mxu0 %v47
    %192 = vmatmul.f32.gmra.mxu0 %v171
    %v193 = vpop.f32.mrf.mxu0
    %v194 = vadd.f32 0.0, %v193
    %195 = vmatmul.f32.gmra.mxu0 %v174
    %v196 = vpop.f32.mrf.mxu0
    %v197 = vadd.f32 0.0, %v196
    %198 = vdwg.mxu0
    %v200 = vsel %vm53, %v41, 0
    %v203 = vsel %vm53, %v42, 0
    %205 = vmatpush.msra.mxu0 0.0
    %206 = vmatpush.msra.mxu0 0.0
    %207 = vmatpush.msra.mxu0 0.0
    %208 = vmatpush.msra.mxu0 0.0
    %209 = vmatpush.msra.mxu0 0.0
    %210 = vmatpush.msra.mxu0 0.0
    %211 = vmatpush.msra.mxu0 0.0
    %212 = vmatpush.msra.mxu0 0.0
    %213 = vmatpush.msra.mxu0 0.0
    %214 = vmatpush.msra.mxu0 0.0
    %215 = vmatpush.msra.mxu0 0.0
    %216 = vmatpush.msra.mxu0 0.0
    %217 = vmatpush.msra.mxu0 0.0
    %218 = vmatpush.msra.mxu0 0.0
    %219 = vmatpush.msra.mxu0 %v48
    %220 = vmatpush.msra.mxu0 %v47
    %221 = vmatmul.f32.gmra.mxu0 %v200
    %v222 = vpop.f32.mrf.mxu0
    %v223 = vadd.f32 0.0, %v222
    %224 = vmatmul.f32.gmra.mxu0 %v203
    %v225 = vpop.f32.mrf.mxu0
    %v226 = vadd.f32 0.0, %v225
    %227 = vdwg.mxu0
    %v229 = vsel %vm53, %v43, 0
    %v232 = vsel %vm53, %v44, 0
    %234 = vmatpush.msra.mxu0 0.0
    %235 = vmatpush.msra.mxu0 0.0
    %236 = vmatpush.msra.mxu0 0.0
    %237 = vmatpush.msra.mxu0 0.0
    %238 = vmatpush.msra.mxu0 0.0
    %239 = vmatpush.msra.mxu0 0.0
    %240 = vmatpush.msra.mxu0 0.0
    %241 = vmatpush.msra.mxu0 0.0
    %242 = vmatpush.msra.mxu0 0.0
    %243 = vmatpush.msra.mxu0 0.0
    %244 = vmatpush.msra.mxu0 0.0
    %245 = vmatpush.msra.mxu0 0.0
    %246 = vmatpush.msra.mxu0 0.0
    %247 = vmatpush.msra.mxu0 0.0
    %248 = vmatpush.msra.mxu0 %v48
    %249 = vmatpush.msra.mxu0 %v47
    %250 = vmatmul.f32.gmra.mxu0 %v229
    %v251 = vpop.f32.mrf.mxu0
    %v252 = vadd.f32 0.0, %v251
    %253 = vmatmul.f32.gmra.mxu0 %v232
    %v254 = vpop.f32.mrf.mxu0
    %v255 = vadd.f32 0.0, %v254
    %256 = vdwg.mxu0
    %v258 = vsel %vm53, %v45, 0
    %v261 = vsel %vm53, %v46, 0
    %263 = vmatpush.msra.mxu0 0.0
    %264 = vmatpush.msra.mxu0 0.0
    %265 = vmatpush.msra.mxu0 0.0
    %266 = vmatpush.msra.mxu0 0.0
    %267 = vmatpush.msra.mxu0 0.0
    %268 = vmatpush.msra.mxu0 0.0
    %269 = vmatpush.msra.mxu0 0.0
    %270 = vmatpush.msra.mxu0 0.0
    %271 = vmatpush.msra.mxu0 0.0
    %272 = vmatpush.msra.mxu0 0.0
    %273 = vmatpush.msra.mxu0 0.0
    %274 = vmatpush.msra.mxu0 0.0
    %275 = vmatpush.msra.mxu0 0.0
    %276 = vmatpush.msra.mxu0 0.0
    %277 = vmatpush.msra.mxu0 %v48
    %278 = vmatpush.msra.mxu0 %v47
    %279 = vmatmul.f32.gmra.mxu0 %v258
    %v280 = vpop.f32.mrf.mxu0
    %v281 = vadd.f32 0.0, %v280
    %282 = vmatmul.f32.gmra.mxu0 %v261
    %v283 = vpop.f32.mrf.mxu0
    %v284 = vadd.f32 0.0, %v283
    %285 = vdwg.mxu0
    %v287 = vsel %vm53, %v49, 0
    %v290 = vsel %vm53, %v50, 0
    %v293 = vsel %vm53, %v51, 0
    %v296 = vsel %vm53, %v52, 0
    %298 = vmatpush.msra.mxu0 0.0
    %299 = vmatpush.msra.mxu0 0.0
    %300 = vmatpush.msra.mxu0 0.0
    %301 = vmatpush.msra.mxu0 0.0
    %302 = vmatpush.msra.mxu0 0.0
    %303 = vmatpush.msra.mxu0 0.0
    %304 = vmatpush.msra.mxu0 0.0
    %305 = vmatpush.msra.mxu0 0.0
    %306 = vmatpush.msra.mxu0 0.0
    %307 = vmatpush.msra.mxu0 0.0
    %308 = vmatpush.msra.mxu0 0.0
    %309 = vmatpush.msra.mxu0 0.0
    %310 = vmatpush.msra.mxu0 0.0
    %311 = vmatpush.msra.mxu0 0.0
    %312 = vmatpush.msra.mxu0 %v81
    %313 = vmatpush.msra.mxu0 %v78
    %314 = vmatmul.f32.gmra.mxu0 %v287
    %v315 = vpop.f32.mrf.mxu0
    %v316 = vadd.f32 0.0, %v315
    %317 = vmatmul.f32.gmra.mxu0 %v290
    %v318 = vpop.f32.mrf.mxu0
    %v319 = vadd.f32 0.0, %v318
    %320 = vmatmul.f32.gmra.mxu0 %v293
    %v321 = vpop.f32.mrf.mxu0
    %v322 = vadd.f32 0.0, %v321
    %323 = vmatmul.f32.gmra.mxu0 %v296
    %v324 = vpop.f32.mrf.mxu0
    %v325 = vadd.f32 0.0, %v324
    %326 = vdwg.mxu0
    %327 = vmatpush.msra.mxu0 0.0
    %328 = vmatpush.msra.mxu0 0.0
    %329 = vmatpush.msra.mxu0 0.0
    %330 = vmatpush.msra.mxu0 0.0
    %331 = vmatpush.msra.mxu0 0.0
    %332 = vmatpush.msra.mxu0 0.0
    %333 = vmatpush.msra.mxu0 0.0
    %334 = vmatpush.msra.mxu0 0.0
    %335 = vmatpush.msra.mxu0 0.0
    %336 = vmatpush.msra.mxu0 0.0
    %337 = vmatpush.msra.mxu0 0.0
    %338 = vmatpush.msra.mxu0 0.0
    %339 = vmatpush.msra.mxu0 0.0
    %340 = vmatpush.msra.mxu0 0.0
    %341 = vmatpush.msra.mxu0 %v110
    %342 = vmatpush.msra.mxu0 %v107
    %343 = vmatmul.f32.gmra.mxu0 %v287
    %v344 = vpop.f32.mrf.mxu0
    %v345 = vadd.f32 0.0, %v344
    %346 = vmatmul.f32.gmra.mxu0 %v290
    %v347 = vpop.f32.mrf.mxu0
    %v348 = vadd.f32 0.0, %v347
    %349 = vmatmul.f32.gmra.mxu0 %v293
    %v350 = vpop.f32.mrf.mxu0
    %v351 = vadd.f32 0.0, %v350
    %352 = vmatmul.f32.gmra.mxu0 %v296
    %v353 = vpop.f32.mrf.mxu0
    %v354 = vadd.f32 0.0, %v353
    %355 = vdwg.mxu0
    %356 = vmatpush.msra.mxu0 0.0
    %357 = vmatpush.msra.mxu0 0.0
    %358 = vmatpush.msra.mxu0 0.0
    %359 = vmatpush.msra.mxu0 0.0
    %360 = vmatpush.msra.mxu0 0.0
    %361 = vmatpush.msra.mxu0 0.0
    %362 = vmatpush.msra.mxu0 0.0
    %363 = vmatpush.msra.mxu0 0.0
    %364 = vmatpush.msra.mxu0 0.0
    %365 = vmatpush.msra.mxu0 0.0
    %366 = vmatpush.msra.mxu0 0.0
    %367 = vmatpush.msra.mxu0 0.0
    %368 = vmatpush.msra.mxu0 0.0
    %369 = vmatpush.msra.mxu0 0.0
    %370 = vmatpush.msra.mxu0 %v139
    %371 = vmatpush.msra.mxu0 %v136
    %372 = vmatmul.f32.gmra.mxu0 %v287
    %v373 = vpop.f32.mrf.mxu0
    %v374 = vadd.f32 0.0, %v373
    %375 = vmatmul.f32.gmra.mxu0 %v290
    %v376 = vpop.f32.mrf.mxu0
    %v377 = vadd.f32 0.0, %v376
    %378 = vmatmul.f32.gmra.mxu0 %v293
    %v379 = vpop.f32.mrf.mxu0
    %v380 = vadd.f32 0.0, %v379
    %381 = vmatmul.f32.gmra.mxu0 %v296
    %v382 = vpop.f32.mrf.mxu0
    %v383 = vadd.f32 0.0, %v382
    %384 = vdwg.mxu0
    %385 = vmatpush.msra.mxu0 0.0
    %386 = vmatpush.msra.mxu0 0.0
    %387 = vmatpush.msra.mxu0 0.0
    %388 = vmatpush.msra.mxu0 0.0
    %389 = vmatpush.msra.mxu0 0.0
    %390 = vmatpush.msra.mxu0 0.0
    %391 = vmatpush.msra.mxu0 0.0
    %392 = vmatpush.msra.mxu0 0.0
    %393 = vmatpush.msra.mxu0 0.0
    %394 = vmatpush.msra.mxu0 0.0
    %395 = vmatpush.msra.mxu0 0.0
    %396 = vmatpush.msra.mxu0 0.0
    %397 = vmatpush.msra.mxu0 0.0
    %398 = vmatpush.msra.mxu0 0.0
    %399 = vmatpush.msra.mxu0 %v168
    %400 = vmatpush.msra.mxu0 %v165
    %401 = vmatmul.f32.gmra.mxu0 %v287
    %v402 = vpop.f32.mrf.mxu0
    %v403 = vadd.f32 0.0, %v402
    %404 = vmatmul.f32.gmra.mxu0 %v290
    %v405 = vpop.f32.mrf.mxu0
    %v406 = vadd.f32 0.0, %v405
    %407 = vmatmul.f32.gmra.mxu0 %v293
    %v408 = vpop.f32.mrf.mxu0
    %v409 = vadd.f32 0.0, %v408
    %410 = vmatmul.f32.gmra.mxu0 %v296
    %v411 = vpop.f32.mrf.mxu0
    %v412 = vadd.f32 0.0, %v411
    %413 = vdwg.mxu0
    %414 = vmatpush.msra.mxu0 0.0
    %415 = vmatpush.msra.mxu0 0.0
    %416 = vmatpush.msra.mxu0 0.0
    %417 = vmatpush.msra.mxu0 0.0
    %418 = vmatpush.msra.mxu0 0.0
    %419 = vmatpush.msra.mxu0 0.0
    %420 = vmatpush.msra.mxu0 0.0
    %421 = vmatpush.msra.mxu0 0.0
    %422 = vmatpush.msra.mxu0 0.0
    %423 = vmatpush.msra.mxu0 0.0
    %424 = vmatpush.msra.mxu0 0.0
    %425 = vmatpush.msra.mxu0 0.0
    %426 = vmatpush.msra.mxu0 0.0
    %427 = vmatpush.msra.mxu0 0.0
    %428 = vmatpush.msra.mxu0 %v197
    %429 = vmatpush.msra.mxu0 %v194
    %430 = vmatmul.f32.gmra.mxu0 %v287
    %v431 = vpop.f32.mrf.mxu0
    %v432 = vadd.f32 0.0, %v431
    %433 = vmatmul.f32.gmra.mxu0 %v290
    %v434 = vpop.f32.mrf.mxu0
    %v435 = vadd.f32 0.0, %v434
    %436 = vmatmul.f32.gmra.mxu0 %v293
    %v437 = vpop.f32.mrf.mxu0
    %v438 = vadd.f32 0.0, %v437
    %439 = vmatmul.f32.gmra.mxu0 %v296
    %v440 = vpop.f32.mrf.mxu0
    %v441 = vadd.f32 0.0, %v440
    %442 = vdwg.mxu0
    %443 = vmatpush.msra.mxu0 0.0
    %444 = vmatpush.msra.mxu0 0.0
    %445 = vmatpush.msra.mxu0 0.0
    %446 = vmatpush.msra.mxu0 0.0
    %447 = vmatpush.msra.mxu0 0.0
    %448 = vmatpush.msra.mxu0 0.0
    %449 = vmatpush.msra.mxu0 0.0
    %450 = vmatpush.msra.mxu0 0.0
    %451 = vmatpush.msra.mxu0 0.0
    %452 = vmatpush.msra.mxu0 0.0
    %453 = vmatpush.msra.mxu0 0.0
    %454 = vmatpush.msra.mxu0 0.0
    %455 = vmatpush.msra.mxu0 0.0
    %456 = vmatpush.msra.mxu0 0.0
    %457 = vmatpush.msra.mxu0 %v226
    %458 = vmatpush.msra.mxu0 %v223
    %459 = vmatmul.f32.gmra.mxu0 %v287
    %v460 = vpop.f32.mrf.mxu0
    %v461 = vadd.f32 0.0, %v460
    %462 = vmatmul.f32.gmra.mxu0 %v290
    %v463 = vpop.f32.mrf.mxu0
    %v464 = vadd.f32 0.0, %v463
    %465 = vmatmul.f32.gmra.mxu0 %v293
    %v466 = vpop.f32.mrf.mxu0
    %v467 = vadd.f32 0.0, %v466
    %468 = vmatmul.f32.gmra.mxu0 %v296
    %v469 = vpop.f32.mrf.mxu0
    %v470 = vadd.f32 0.0, %v469
    %471 = vdwg.mxu0
    %472 = vmatpush.msra.mxu0 0.0
    %473 = vmatpush.msra.mxu0 0.0
    %474 = vmatpush.msra.mxu0 0.0
    %475 = vmatpush.msra.mxu0 0.0
    %476 = vmatpush.msra.mxu0 0.0
    %477 = vmatpush.msra.mxu0 0.0
    %478 = vmatpush.msra.mxu0 0.0
    %479 = vmatpush.msra.mxu0 0.0
    %480 = vmatpush.msra.mxu0 0.0
    %481 = vmatpush.msra.mxu0 0.0
    %482 = vmatpush.msra.mxu0 0.0
    %483 = vmatpush.msra.mxu0 0.0
    %484 = vmatpush.msra.mxu0 0.0
    %485 = vmatpush.msra.mxu0 0.0
    %486 = vmatpush.msra.mxu0 %v255
    %487 = vmatpush.msra.mxu0 %v252
    %488 = vmatmul.f32.gmra.mxu0 %v287
    %v489 = vpop.f32.mrf.mxu0
    %v490 = vadd.f32 0.0, %v489
    %491 = vmatmul.f32.gmra.mxu0 %v290
    %v492 = vpop.f32.mrf.mxu0
    %v493 = vadd.f32 0.0, %v492
    %494 = vmatmul.f32.gmra.mxu0 %v293
    %v495 = vpop.f32.mrf.mxu0
    %v496 = vadd.f32 0.0, %v495
    %497 = vmatmul.f32.gmra.mxu0 %v296
    %v498 = vpop.f32.mrf.mxu0
    %v499 = vadd.f32 0.0, %v498
    %500 = vdwg.mxu0
    %501 = vmatpush.msra.mxu0 0.0
    %502 = vmatpush.msra.mxu0 0.0
    %503 = vmatpush.msra.mxu0 0.0
    %504 = vmatpush.msra.mxu0 0.0
    %505 = vmatpush.msra.mxu0 0.0
    %506 = vmatpush.msra.mxu0 0.0
    %507 = vmatpush.msra.mxu0 0.0
    %508 = vmatpush.msra.mxu0 0.0
    %509 = vmatpush.msra.mxu0 0.0
    %510 = vmatpush.msra.mxu0 0.0
    %511 = vmatpush.msra.mxu0 0.0
    %512 = vmatpush.msra.mxu0 0.0
    %513 = vmatpush.msra.mxu0 0.0
    %514 = vmatpush.msra.mxu0 0.0
    %515 = vmatpush.msra.mxu0 %v284
    %516 = vmatpush.msra.mxu0 %v281
    %517 = vmatmul.f32.gmra.mxu0 %v287
    %v518 = vpop.f32.mrf.mxu0
    %v519 = vadd.f32 0.0, %v518
    %520 = vmatmul.f32.gmra.mxu0 %v290
    %v521 = vpop.f32.mrf.mxu0
    %v522 = vadd.f32 0.0, %v521
    %523 = vmatmul.f32.gmra.mxu0 %v293
    %v524 = vpop.f32.mrf.mxu0
    %v525 = vadd.f32 0.0, %v524
    %526 = vmatmul.f32.gmra.mxu0 %v296
    %v527 = vpop.f32.mrf.mxu0
    %v528 = vadd.f32 0.0, %v527
    %529 = vdwg.mxu0
    %vm530 = vcmask 261120
    %531 = vst.msk [vmem:[#allocation5] sm:$0xff] %vm530, %v316
    %532 = vst.msk [vmem:[#allocation5 + $0x8] sm:$0xff] %vm530, %v319
    %533 = vst.msk [vmem:[#allocation5 + $0x10] sm:$0xff] %vm530, %v322
    %534 = vst.msk [vmem:[#allocation5 + $0x18] sm:$0xff] %vm530, %v325
    %535 = vst.msk [vmem:[#allocation5 + $0x20] sm:$0xff] %vm530, %v345
    %536 = vst.msk [vmem:[#allocation5 + $0x28] sm:$0xff] %vm530, %v348
    %537 = vst.msk [vmem:[#allocation5 + $0x30] sm:$0xff] %vm530, %v351
    %538 = vst.msk [vmem:[#allocation5 + $0x38] sm:$0xff] %vm530, %v354
    %539 = vst.msk [vmem:[#allocation5 + $0x40] sm:$0xff] %vm530, %v374
    %540 = vst.msk [vmem:[#allocation5 + $0x48] sm:$0xff] %vm530, %v377
    %541 = vst.msk [vmem:[#allocation5 + $0x50] sm:$0xff] %vm530, %v380
    %542 = vst.msk [vmem:[#allocation5 + $0x58] sm:$0xff] %vm530, %v383
    %543 = vst.msk [vmem:[#allocation5 + $0x60] sm:$0xff] %vm530, %v403
    %544 = vst.msk [vmem:[#allocation5 + $0x68] sm:$0xff] %vm530, %v406
    %545 = vst.msk [vmem:[#allocation5 + $0x70] sm:$0xff] %vm530, %v409
    %546 = vst.msk [vmem:[#allocation5 + $0x78] sm:$0xff] %vm530, %v412
    %547 = vst.msk [vmem:[#allocation5 + $0x80] sm:$0xff] %vm530, %v432
    %548 = vst.msk [vmem:[#allocation5 + $0x88] sm:$0xff] %vm530, %v435
    %549 = vst.msk [vmem:[#allocation5 + $0x90] sm:$0xff] %vm530, %v438
    %550 = vst.msk [vmem:[#allocation5 + $0x98] sm:$0xff] %vm530, %v441
    %551 = vst.msk [vmem:[#allocation5 + $0xa0] sm:$0xff] %vm530, %v461
    %552 = vst.msk [vmem:[#allocation5 + $0xa8] sm:$0xff] %vm530, %v464
    %553 = vst.msk [vmem:[#allocation5 + $0xb0] sm:$0xff] %vm530, %v467
    %554 = vst.msk [vmem:[#allocation5 + $0xb8] sm:$0xff] %vm530, %v470
    %555 = vst.msk [vmem:[#allocation5 + $0xc0] sm:$0xff] %vm530, %v490
    %556 = vst.msk [vmem:[#allocation5 + $0xc8] sm:$0xff] %vm530, %v493
    %557 = vst.msk [vmem:[#allocation5 + $0xd0] sm:$0xff] %vm530, %v496
    %558 = vst.msk [vmem:[#allocation5 + $0xd8] sm:$0xff] %vm530, %v499
    %559 = vst.msk [vmem:[#allocation5 + $0xe0] sm:$0xff] %vm530, %v519
    %560 = vst.msk [vmem:[#allocation5 + $0xe8] sm:$0xff] %vm530, %v522
    %561 = vst.msk [vmem:[#allocation5 + $0xf0] sm:$0xff] %vm530, %v525
    %562 = vst.msk [vmem:[#allocation5 + $0xf8] sm:$0xff] %vm530, %v528
    // Predicated region
    $region18: #{tpu_custom_call.1} parent=1 // pred_check
      _
    $region19: #{tpu_custom_call.1} parent=1 // pred_check_branch
      %564 = sbr.rel (0) target = $region21
    $region20: #{tpu_custom_call.1} parent=1 // pred_region
      %566 = vsyncadd [#allocation4], 0
      %s567 = sshll.u32 [#allocation5], 4
      %s568 = int_to_ptr.vmem [resolvable:$true] %s567
      %s569 = sshll.u32 %s3, 4
      %s570 = int_to_ptr.hbm [resolvable:$true] %s569
      %575 = dma.vmem_to_hbm [thread:$0]  %s568, 4096, %s570, [#allocation4], 128, 128, 8
    $region21: #{tpu_custom_call.1} parent=1 // pred_fallthru
      _
    // Predicated region
    $region22: #{tpu_custom_call.1} parent=1 // pred_check
      _
    $region23: #{tpu_custom_call.1} parent=1 // pred_check_branch
      %577 = sbr.rel (0) target = $region25
    $region24: #{tpu_custom_call.1} parent=1 // pred_region
      %579 = dma.done [#allocation4], 4096
    $region25: #{tpu_custom_call.1} parent=1 // pred_fallthru
      _
    %580 = vsyncpa [#allocation3], 1
    %581 = vsyncpa [#allocation4], 1

</llo_original>
